<compile_context>
chip_gen: v5e
topology: v5e:2x2
jax: 0.10.0
libtpu: 0.0.40
codegen_flags: <defaults>
</compile_context>

<pallas_src>
import functools

import jax
import jax.numpy as jnp
from jax.experimental import pallas as pl
from jax.experimental.pallas import tpu as pltpu


def _adaptive_bins(in_size, out_size):
    """Static (start, end) bins matching torch adaptive_avg_pool semantics."""
    bins = []
    for i in range(out_size):
        start = (i * in_size) // out_size
        end = -(-((i + 1) * in_size) // out_size)  # ceil division
        bins.append((start, end))
    return tuple(bins)


def _jnp_pool_sigmoid(x, latent_size):
    """Plain-jnp adaptive_avg_pool2d((latent_size, 1)) + sigmoid (fallback/ref)."""
    H = x.shape[-2]
    xf = x.astype(jnp.float32)
    cols = []
    for (h0, h1) in _adaptive_bins(H, latent_size):
        cols.append(jnp.mean(xf[..., h0:h1, :], axis=(-2, -1)))
    z = jnp.stack(cols, axis=-1)[..., None]
    return jax.nn.sigmoid(z).astype(x.dtype)


def _pool_sigmoid_kernel_2d(x_ref, o_ref, *, bins, width):
    # x_ref: (TB, H*W). Every bin boundary h*width is 128-lane aligned, so the
    # slices below are aligned views (no relayout). Sums hit VPU/XLU, exp EUP.
    for i, (h0, h1) in enumerate(bins):
        seg = x_ref[:, h0 * width:h1 * width].astype(jnp.float32)
        inv = 1.0 / float((h1 - h0) * width)
        z = jnp.sum(seg, axis=-1, keepdims=True) * inv            # (TB, 1)
        o_ref[:, i:i + 1] = (1.0 / (1.0 + jnp.exp(-z))).astype(o_ref.dtype)


def _pool_sigmoid_kernel_3d(x_ref, o_ref, *, bins, width):
    # x_ref: (TB, H, W). Bins slice the sublane (H) axis so arbitrary bin
    # boundaries never force lane relayouts.
    for i, (h0, h1) in enumerate(bins):
        seg = x_ref[:, h0:h1, :].astype(jnp.float32)
        inv = 1.0 / float((h1 - h0) * width)
        z = (jnp.sum(seg, axis=(-2, -1)) * inv)[:, None]          # (TB, 1)
        o_ref[:, i:i + 1] = (1.0 / (1.0 + jnp.exp(-z))).astype(o_ref.dtype)


def _vmem_physical_bytes():
    try:
        return int(pltpu.get_tpu_info().vmem_capacity_bytes)
    except Exception:
        return 64 << 20  # conservative (v7x per-TensorCore)


def to_latent_dimensions(x, latent_size=2, *, jnp_fallback_bytes=1 << 20):
    """adaptive_avg_pool2d(x, (latent_size, 1)) followed by sigmoid.

    x: (..., H, W) float  ->  (..., latent_size, 1), same dtype.
    Matches torch.nn.functional.adaptive_avg_pool2d + torch.sigmoid.
    """
    lead = x.shape[:-2]
    H, W = x.shape[-2], x.shape[-1]
    rows = 1
    for d in lead:
        rows *= d

    out_dtype = x.dtype if jnp.issubdtype(x.dtype, jnp.floating) else jnp.float32
    x = x.astype(out_dtype)
    itemsize = x.dtype.itemsize
    bytes_per_row = H * W * itemsize
    total_bytes = rows * bytes_per_row

    # Tiny inputs: a standalone kernel launch is pure fixed overhead.
    if total_bytes < jnp_fallback_bytes:
        return _jnp_pool_sigmoid(x, latent_size)

    phys_vmem = _vmem_physical_bytes()
    # Double-buffered input budget: well under every generation's scoped limit
    # (16 MiB v5e default, 32 MiB v6e/v7x) and under v7x's 64 MiB physical.
    in_budget = min(phys_vmem // 2, 28 << 20)

    if 16 * bytes_per_row > in_budget:
        # TODO(synk): multi-MiB rows need an inner width-chunked reduction
        # (emit_pipeline over the H*W axis with an f32 accumulator); fall back
        # to XLA for now so v7x never VMEM-OOMs on the minimum 8-row block.
        return _jnp_pool_sigmoid(x, latent_size)

    bins = _adaptive_bins(H, latent_size)

    # Row tile: largest that fits the double-buffered VMEM budget, 8-aligned.
    tb = max(8, ((in_budget // 2) // bytes_per_row // 8) * 8)
    if rows >= 16:
        # Keep at least 2 grid steps so the "parallel" axis can shard across
        # v7x's two TensorCores (costs nothing on v5e/v6e).
        tb = min(tb, max(8, 8 * ((rows // 2) // 8)))
    if tb >= rows:
        tb = rows  # full-extent block: always layout-legal
    grid = (pl.cdiv(rows, tb),)

    lane_aligned = all((h0 * W) % 128 == 0 and (h1 * W) % 128 == 0
                       for (h0, h1) in bins)
    if lane_aligned:
        x_in = x.reshape(rows, H * W)          # free contiguous view
        kernel = functools.partial(_pool_sigmoid_kernel_2d, bins=bins, width=W)
        in_spec = pl.BlockSpec((tb, H * W), lambda i: (i, 0))
    else:
        x_in = x.reshape(rows, H, W)           # free contiguous view
        kernel = functools.partial(_pool_sigmoid_kernel_3d, bins=bins, width=W)
        in_spec = pl.BlockSpec((tb, H, W), lambda i: (i, 0, 0))

    # Explicit scoped-VMEM limit: sized to the double-buffered input + output
    # plus slack, never below 16 MiB, never above ~3/4 of physical VMEM.
    vmem_limit = 2 * tb * bytes_per_row + 2 * tb * latent_size * 4 + (4 << 20)
    vmem_limit = min(max(vmem_limit, 16 << 20), (phys_vmem // 4) * 3)

    out = pl.pallas_call(
        kernel,
        out_shape=jax.ShapeDtypeStruct((rows, latent_size), out_dtype),
        grid=grid,
        in_specs=[in_spec],
        out_specs=pl.BlockSpec((tb, latent_size), lambda i: (i, 0)),
        compiler_params=pltpu.CompilerParams(
            dimension_semantics=("parallel",),
            vmem_limit_bytes=int(vmem_limit)),
    )(x_in)

    return out.reshape(*lead, latent_size, 1)


if __name__ == "__main__":
    def _check(x, latent_size, atol):
        out = jax.block_until_ready(
            to_latent_dimensions(x, latent_size, jnp_fallback_bytes=0))
        ref = _jnp_pool_sigmoid(x, latent_size)
        assert out.shape == x.shape[:-2] + (latent_size, 1), (out.shape, x.shape)
        assert out.dtype == x.dtype, (out.dtype, x.dtype)
        assert jnp.allclose(out.astype(jnp.float32), ref.astype(jnp.float32),
                            atol=atol, rtol=1e-4)

    key = jax.random.PRNGKey(0)
    k1, k2, k3, k4, k5 = jax.random.split(key, 5)

    # Main spec shape (4-D NCHW), lane-aligned bins -> 2-D lane-dense path.
    _check(jax.random.normal(k1, (2, 4, 16, 16), jnp.float32), 2, 1e-5)
    # 3-D input (B, C, L) as molearn actually feeds this module.
    _check(jax.random.normal(k2, (2, 8, 128), jnp.float32), 2, 1e-5)
    # Multi-step grid with a ragged (masked) tail block.
    _check(jax.random.normal(k3, (17, 8, 32, 16), jnp.float32), 2, 1e-5)
    # Non-128-aligned bin boundaries -> 3-D sublane-slicing path.
    _check(jax.random.normal(k4, (3, 5, 10, 12), jnp.float32), 3, 1e-5)
    # bf16 input read directly, accumulated in f32, multi-step grid.
    _check(jax.random.normal(k5, (4, 8, 16, 16), jnp.bfloat16), 2, 1e-2)

    print("KERNEL_OK")
</pallas_src>

<mosaic_0001>
module attributes {stable_mosaic.version = 11 : i64} {
  func.func @_pool_sigmoid_kernel_2d(%arg0: i32, %arg1: memref<8x256xf32, #tpu.memory_space<vmem>>, %arg2: memref<8x2xf32, #tpu.memory_space<vmem>>) attributes {dimension_semantics = [#tpu.dimension_semantics<parallel>], iteration_bounds = array<i64: 1>, scalar_prefetch = 0 : i64, scratch_operands = 0 : i64, tpu.core_type = #tpu.core_type<tc>, window_params = [{transform_indices = @transform_0, window_bounds = array<i64: 8, 256>}, {transform_indices = @transform_1, window_bounds = array<i64: 8, 2>}]} {
    %c0 = arith.constant 0 : index
    %c0_0 = arith.constant 0 : index
    %0 = vector.load %arg1[%c0, %c0_0] : memref<8x256xf32, #tpu.memory_space<vmem>>, vector<8x128xf32>
    %cst = arith.constant dense<0.000000e+00> : vector<8xf32>
    %1 = vector.multi_reduction <add>, %0, %cst [1] : vector<8x128xf32> to vector<8xf32>
    %2 = vector.shape_cast %1 : vector<8xf32> to vector<8x1xf32>
    %cst_1 = arith.constant 7.812500e-03 : f32
    %3 = vector.broadcast %cst_1 : f32 to vector<8x1xf32>
    %4 = arith.mulf %2, %3 : vector<8x1xf32>
    %cst_2 = arith.constant 0.000000e+00 : f32
    %5 = vector.broadcast %cst_2 : f32 to vector<8x1xf32>
    %6 = arith.subf %5, %4 : vector<8x1xf32>
    %7 = math.exp %6 : vector<8x1xf32>
    %cst_3 = arith.constant 1.000000e+00 : f32
    %8 = vector.broadcast %cst_3 : f32 to vector<8x1xf32>
    %9 = arith.addf %8, %7 : vector<8x1xf32>
    %cst_4 = arith.constant 1.000000e+00 : f32
    %10 = vector.broadcast %cst_4 : f32 to vector<8x1xf32>
    %11 = arith.divf %10, %9 : vector<8x1xf32>
    %c0_5 = arith.constant 0 : index
    %c0_6 = arith.constant 0 : index
    %12 = vector.load %arg2[%c0_5, %c0_6] : memref<8x2xf32, #tpu.memory_space<vmem>>, vector<8x1xf32>
    tpu.vector_store %arg2[%c0_5, %c0_6], %11 {strides = array<i32>} : memref<8x2xf32, #tpu.memory_space<vmem>>, vector<8x1xf32>,
    %c0_7 = arith.constant 0 : index
    %c128 = arith.constant 128 : index
    %13 = vector.load %arg1[%c0_7, %c128] : memref<8x256xf32, #tpu.memory_space<vmem>>, vector<8x128xf32>
    %cst_8 = arith.constant dense<0.000000e+00> : vector<8xf32>
    %14 = vector.multi_reduction <add>, %13, %cst_8 [1] : vector<8x128xf32> to vector<8xf32>
    %15 = vector.shape_cast %14 : vector<8xf32> to vector<8x1xf32>
    %cst_9 = arith.constant 7.812500e-03 : f32
    %16 = vector.broadcast %cst_9 : f32 to vector<8x1xf32>
    %17 = arith.mulf %15, %16 : vector<8x1xf32>
    %cst_10 = arith.constant 0.000000e+00 : f32
    %18 = vector.broadcast %cst_10 : f32 to vector<8x1xf32>
    %19 = arith.subf %18, %17 : vector<8x1xf32>
    %20 = math.exp %19 : vector<8x1xf32>
    %cst_11 = arith.constant 1.000000e+00 : f32
    %21 = vector.broadcast %cst_11 : f32 to vector<8x1xf32>
    %22 = arith.addf %21, %20 : vector<8x1xf32>
    %cst_12 = arith.constant 1.000000e+00 : f32
    %23 = vector.broadcast %cst_12 : f32 to vector<8x1xf32>
    %24 = arith.divf %23, %22 : vector<8x1xf32>
    %c0_13 = arith.constant 0 : index
    %c1 = arith.constant 1 : index
    %25 = vector.load %arg2[%c0_13, %c1] : memref<8x2xf32, #tpu.memory_space<vmem>>, vector<8x1xf32>
    tpu.vector_store %arg2[%c0_13, %c1], %24 {strides = array<i32>} : memref<8x2xf32, #tpu.memory_space<vmem>>, vector<8x1xf32>,
    return
  }
  func.func @transform_0(%arg0: i32) -> (i32, i32) {
    %c0_i32 = arith.constant 0 : i32
    %c0_i32_0 = arith.constant 0 : i32
    return %arg0, %c0_i32 : i32, i32
  }
  func.func @transform_1(%arg0: i32) -> (i32, i32) {
    %c0_i32 = arith.constant 0 : i32
    %c0_i32_0 = arith.constant 0 : i32
    return %arg0, %c0_i32 : i32, i32
  }
}

</mosaic_0001>

<llo_original>
// kernel: tpu_custom_call.1
$region0: #{tpu_custom_call.1}
  #allocation0 [shape = 'u32[]', space=smem, size = 0x4, offset = 0x4, fixed_abs, tag = 'smem constant byte address 0x4 - core index']
  #allocation1 [shape = 'u32[72,128]{1,0:T(1,128)}', space=vmem, size = 0x9000, scoped, tag = 'internal scratch']
  %s0 = inlined_call_operand.hbm [shape: f32[8,256], index: 0, kind: input, shape index: {}]
  %s1 = inlined_call_operand.vmem [shape: f32[8,2], index: 1, kind: output, shape index: {}]
  %s2 = sld [smem:[#allocation0]]
  $region18: #{tpu_custom_call.1} parent=0
    _
  %s4 = ssub.s32 1, %s2
  %s5 = scalar_select 0, %s4, %s2
  $region1: #{tpu_custom_call.1} parent=0
    #allocation2 [shape = 'u8[8192]{0}', space=vmem, size = 0x2000, scoped, tag = 'input window, operand 0, single buffered']
    #allocation3 [shape = 's32[1]{0}', space=sflag, size = 0x4, scoped, tag = 'scoped memory for tpu_custom_call.1']
    %6 = vsyncpa [#allocation3], 0
    // Predicated region
    $region2: #{tpu_custom_call.1} parent=1 // pred_check
      _
    $region3: #{tpu_custom_call.1} parent=1 // pred_check_branch
      %8 = sbr.rel (0) target = $region5
    $region4: #{tpu_custom_call.1} parent=1 // pred_region
      %10 = vsyncadd [#allocation3], 0
      %s12 = sshll.u32 %s0, 4
      %s13 = int_to_ptr.hbm [resolvable:$true] %s12
      %s14 = sshll.u32 [#allocation2], 4
      %s15 = int_to_ptr.vmem [resolvable:$true] %s14
      %17 = dma.hbm_to_vmem [thread:$0]  %s13, 256, %s15, [#allocation3]
    $region5: #{tpu_custom_call.1} parent=1 // pred_fallthru
      _
    // Predicated region
    $region6: #{tpu_custom_call.1} parent=1 // pred_check
      _
    $region7: #{tpu_custom_call.1} parent=1 // pred_check_branch
      %19 = sbr.rel (0) target = $region9
    $region8: #{tpu_custom_call.1} parent=1 // pred_region
      %21 = dma.done [#allocation3], 256
    $region9: #{tpu_custom_call.1} parent=1 // pred_fallthru
      _
    %v22 = vld [vmem:[#allocation2] sm:$0xff]
    %23 = vadd.xlane.f32.xlu0 %v22
    %v24 = vpop.xlane.xlu0 %23
    %v25 = vmul.f32 %v24, 0.0078125
    %v26 = vsub.f32 0.0, %v25
    %v27 = vmul.f32 %v26, 1.442695
    %v28 = vpow.pop %v27
    %v29 = vadd.f32 %v28, 1.0
    %v30 = vrcp.pop %v29
    %v31 = vmul.f32 %v29, %v30
    %v32 = vsub.f32 1.0, %v31
    %v33 = vmul.f32 %v30, %v32
    %v34 = vadd.f32 %v30, %v33
    %vm35 = vweird.f32 %v29
    %vm36 = vweird.f32 %v30
    %vm37 = vmor %vm35, %vm36
    %v38 = vsel %vm37, %v30, %v34
    %v39 = vand.u32 2147483647, %v29
    %vm40 = vcmp.eq.f32.partialorder %v39, 8.507059e+37
    %v41 = vand.u32 %v29, 2147483648
    %v42 = vor.u32 1.1754944e-38, %v41
    %v43 = vsel %vm40, %v42, %v38
    %v44 = vmul.f32 1.0, %v43
    %vm45 = vcmask 7168
    %46 = vst.msk [vmem:[%s1] sm:$0xff] %vm45, %v44
    %v47 = vld [vmem:[#allocation2 + $0x8] sm:$0xff]
    %48 = vadd.xlane.f32.xlu0 %v47
    %v49 = vpop.xlane.xlu0 %48
    %v50 = vmul.f32 %v49, 0.0078125
    %v51 = vsub.f32 0.0, %v50
    %v52 = vmul.f32 %v51, 1.442695
    %v53 = vpow.pop %v52
    %v54 = vadd.f32 %v53, 1.0
    %v55 = vrcp.pop %v54
    %v56 = vmul.f32 %v54, %v55
    %v57 = vsub.f32 1.0, %v56
    %v58 = vmul.f32 %v55, %v57
    %v59 = vadd.f32 %v55, %v58
    %vm60 = vweird.f32 %v54
    %vm61 = vweird.f32 %v55
    %vm62 = vmor %vm60, %vm61
    %v63 = vsel %vm62, %v55, %v59
    %v64 = vand.u32 2147483647, %v54
    %vm65 = vcmp.eq.f32.partialorder %v64, 8.507059e+37
    %v66 = vand.u32 %v54, 2147483648
    %v67 = vor.u32 1.1754944e-38, %v66
    %v68 = vsel %vm65, %v67, %v63
    %v69 = vmul.f32 1.0, %v68
    %vm70 = vcmask 15368
    %71 = vst.msk [vmem:[%s1] sm:$0xff] %vm70, %v69
    // Predicated region
    $region10: #{tpu_custom_call.1} parent=1 // pred_check
      _
    $region11: #{tpu_custom_call.1} parent=1 // pred_check_branch
      %73 = sbr.rel (0) target = $region13
    $region12: #{tpu_custom_call.1} parent=1 // pred_region
      _
    $region13: #{tpu_custom_call.1} parent=1 // pred_fallthru
      _
    // Predicated region
    $region14: #{tpu_custom_call.1} parent=1 // pred_check
      _
    $region15: #{tpu_custom_call.1} parent=1 // pred_check_branch
      %75 = sbr.rel (0) target = $region17
    $region16: #{tpu_custom_call.1} parent=1 // pred_region
      _
    $region17: #{tpu_custom_call.1} parent=1 // pred_fallthru
      _
    %76 = vsyncpa [#allocation3], 1

</llo_original>
